<compile_context>
chip_gen: v7x
topology: tpu7x:2x2x1
jax: 0.10.0
libtpu: 0.0.40
codegen_flags: <defaults>
</compile_context>

<pallas_src>
import jax
import jax.numpy as jnp
from jax.experimental import pallas as pl
from jax.experimental.pallas import tpu as pltpu

D_IN = 1024       # CLIP ViT-L/14 hidden size
D_H = 256         # MLP hidden
D_OUT = 500       # num_classes in the reference instantiation
D_OUT_PAD = 512   # lane-dense (multiple of 128) padded output width
BN_EPS = 1e-5
MAX_TB = 1024     # max batch-tile rows per grid step


def _round_up(x, m):
    return ((x + m - 1) // m) * m


def _mlp_kernel(x_ref, w1_ref, shift_ref, w2_ref, b2_ref, o_ref):
    # x:  (tb, 1024) f32      w1: (1024, 256) bf16 (BN scale folded in)
    # shift: (1, 256) f32     w2: (256, 512) bf16   b2: (1, 512) f32
    x = x_ref[...].astype(jnp.bfloat16)        # in-kernel cast (VPU, free slot)
    h = jnp.dot(x, w1_ref[...], preferred_element_type=jnp.float32)
    h = h + shift_ref[...]                     # fused Linear bias + BN shift (f32)
    h = jnp.maximum(h, 0.0)                    # ReLU (f32 VPU)
    # Dropout(p=0.5) is identity at inference time.
    h = h.astype(jnp.bfloat16)                 # bf16 LHS for second MXU pass
    y = jnp.dot(h, w2_ref[...], preferred_element_type=jnp.float32)
    y = y + b2_ref[...]
    o_ref[...] = y.astype(o_ref.dtype)


def prepare_params(params):
    """One-time parameter preprocessing (call ONCE, outside the hot path).

    Folds eval-mode BatchNorm1d into W1 / shift, casts matmul weights to bf16,
    and pads the output projection 500 -> 512 for lane-dense stores.
    """
    w1, b1 = params["w1"], params["b1"]
    gamma, beta = params["gamma"], params["beta"]
    rmean, rvar = params["running_mean"], params["running_var"]
    w2, b2 = params["w2"], params["b2"]

    scale = gamma / jnp.sqrt(rvar + BN_EPS)                     # (256,)
    shift = beta - rmean * scale                                # (256,)
    w1_folded = (w1 * scale[None, :]).astype(jnp.bfloat16)      # (1024, 256)
    shift_folded = (b1 * scale + shift).reshape(1, D_H)         # (1, 256) f32

    w2_p = jnp.zeros((D_H, D_OUT_PAD), jnp.float32).at[:, :D_OUT].set(w2)
    w2_p = w2_p.astype(jnp.bfloat16)                            # (256, 512)
    b2_p = jnp.zeros((1, D_OUT_PAD), jnp.float32).at[0, :D_OUT].set(b2)

    return dict(w1=w1_folded, shift=shift_folded, w2=w2_p, b2=b2_p)


def _pick_tile(B):
    """Batch tile: as large as possible (<= MAX_TB), but >= 2 tiles when B
    allows so the 'parallel' grid axis shards across both v7x TensorCores."""
    if B >= 16:
        tb = min(MAX_TB, _round_up(pl.cdiv(B, 2), 8))
    else:
        tb = _round_up(max(B, 1), 8)
    return max(8, tb)


def clip_mlp_head(cls_feats, prepped, *, tb=None, out_dtype=jnp.float32, trim=True):
    """Apply the fused MLP head to CLS-token features.

    cls_feats: [B, 1024] float32
    prepped:   output of prepare_params() (folded/padded/bf16 weights)
    returns:   [B, 500] (out_dtype) if trim, else padded [Bp, 512]
    """
    B, D = cls_feats.shape
    assert D == D_IN

    if tb is None:
        tb = _pick_tile(B)
    tb = max(8, (tb // 8) * 8)

    n_tiles = pl.cdiv(B, tb)
    Bp = n_tiles * tb
    x = cls_feats
    if Bp != B:
        # Rare path: pad only when the tile doesn't divide the batch.
        x = jnp.pad(x, ((0, Bp - B), (0, 0)))

    out_p = pl.pallas_call(
        _mlp_kernel,
        out_shape=jax.ShapeDtypeStruct((Bp, D_OUT_PAD), out_dtype),
        grid_spec=pltpu.PrefetchScalarGridSpec(
            num_scalar_prefetch=0,
            grid=(n_tiles,),
            in_specs=[
                pl.BlockSpec((tb, D_IN), lambda i: (i, 0)),        # x tile (f32)
                pl.BlockSpec((D_IN, D_H), lambda i: (0, 0)),       # W1' (resident)
                pl.BlockSpec((1, D_H), lambda i: (0, 0)),          # fused shift
                pl.BlockSpec((D_H, D_OUT_PAD), lambda i: (0, 0)),  # W2 (resident)
                pl.BlockSpec((1, D_OUT_PAD), lambda i: (0, 0)),    # b2
            ],
            out_specs=pl.BlockSpec((tb, D_OUT_PAD), lambda i: (i, 0)),
        ),
        compiler_params=pltpu.CompilerParams(
            dimension_semantics=("parallel",),   # shards tiles across v7x TCs
        ),
    )(x, prepped["w1"], prepped["shift"], prepped["w2"], prepped["b2"])

    if not trim:
        # Consumers that tolerate the padded (Bp, 512) layout avoid an extra
        # full HBM read+write of the output.
        return out_p
    return out_p[:B, :D_OUT]


def init_params(key):
    k1, k2, k3, k4 = jax.random.split(key, 4)
    # Deterministic, PyTorch-shaped parameters (stored transposed: [in, out]).
    w1 = jax.random.normal(k1, (D_IN, D_H), jnp.float32) * 0.02
    b1 = jax.random.normal(k2, (D_H,), jnp.float32) * 0.01
    w2 = jax.random.normal(k3, (D_H, D_OUT), jnp.float32) * 0.02
    b2 = jax.random.normal(k4, (D_OUT,), jnp.float32) * 0.01
    return dict(
        w1=w1, b1=b1,
        gamma=jnp.ones((D_H,), jnp.float32),
        beta=jnp.zeros((D_H,), jnp.float32),
        running_mean=jnp.zeros((D_H,), jnp.float32),
        running_var=jnp.ones((D_H,), jnp.float32),
        w2=w2, b2=b2,
    )


def reference(cls_feats, params):
    """Pure-JAX reference of the MLP head (eval mode), same bf16 matmul paths."""
    scale = params["gamma"] / jnp.sqrt(params["running_var"] + BN_EPS)
    shift = params["beta"] - params["running_mean"] * scale
    w1f = (params["w1"] * scale[None, :]).astype(jnp.bfloat16)
    shiftf = params["b1"] * scale + shift
    h = jnp.dot(cls_feats.astype(jnp.bfloat16), w1f,
                preferred_element_type=jnp.float32) + shiftf
    h = jnp.maximum(h, 0.0).astype(jnp.bfloat16)
    y = jnp.dot(h, params["w2"].astype(jnp.bfloat16),
                preferred_element_type=jnp.float32) + params["b2"]
    return y


def reference_f32(cls_feats, params):
    """Full-precision reference (loose sanity check of the bf16 path)."""
    scale = params["gamma"] / jnp.sqrt(params["running_var"] + BN_EPS)
    shift = params["beta"] - params["running_mean"] * scale
    h = cls_feats @ params["w1"] + params["b1"]
    h = h * scale + shift
    h = jnp.maximum(h, 0.0)
    return h @ params["w2"] + params["b2"]


if __name__ == "__main__":
    key = jax.random.PRNGKey(0)
    kf, kp = jax.random.split(key)

    B = 8
    # Stand-in for image_features[:, 0, :] from the frozen CLIP backbone.
    cls_feats = jax.random.normal(kf, (B, D_IN), jnp.float32)
    params = init_params(kp)

    # One-time preprocessing (hoisted out of the per-call path).
    prepped = jax.tree_util.tree_map(jax.block_until_ready, prepare_params(params))

    out = clip_mlp_head(cls_feats, prepped)
    out = jax.block_until_ready(out)

    assert out.shape == (B, D_OUT)

    ref = reference(cls_feats, params)
    assert jnp.allclose(out, ref, atol=1e-3, rtol=1e-3), \
        "mismatch vs bf16-matched JAX reference"

    ref32 = reference_f32(cls_feats, params)
    assert jnp.allclose(out, ref32, atol=5e-2, rtol=5e-2), \
        "mismatch vs f32 JAX reference"

    # Exercise a batch that needs >= 2 tiles (v7x both-cores path) + padding.
    B2 = 300
    cls2 = jax.random.normal(jax.random.PRNGKey(1), (B2, D_IN), jnp.float32)
    out2 = jax.block_until_ready(clip_mlp_head(cls2, prepped))
    assert out2.shape == (B2, D_OUT)
    assert jnp.allclose(out2, reference(cls2, params), atol=1e-3, rtol=1e-3), \
        "multi-tile mismatch vs bf16-matched JAX reference"

    print("KERNEL_OK")
</pallas_src>

<mosaic_0001>
module attributes {stable_mosaic.version = 11 : i64} {
  func.func @_mlp_kernel(%arg0: i32, %arg1: memref<8x1024xf32, #tpu.memory_space<vmem>>, %arg2: memref<1024x256xbf16, #tpu.memory_space<vmem>>, %arg3: memref<1x256xf32, #tpu.memory_space<vmem>>, %arg4: memref<256x512xbf16, #tpu.memory_space<vmem>>, %arg5: memref<1x512xf32, #tpu.memory_space<vmem>>, %arg6: memref<8x512xf32, #tpu.memory_space<vmem>>) attributes {dimension_semantics = [#tpu.dimension_semantics<parallel>], iteration_bounds = array<i64: 1>, scalar_prefetch = 0 : i64, scratch_operands = 0 : i64, tpu.core_type = #tpu.core_type<tc>, window_params = [{transform_indices = @transform_0, window_bounds = array<i64: 8, 1024>}, {pipeline_mode = #tpu.pipeline_mode<synchronous>, transform_indices = @transform_1, window_bounds = array<i64: 1024, 256>}, {pipeline_mode = #tpu.pipeline_mode<synchronous>, transform_indices = @transform_2, window_bounds = array<i64: 1, 256>}, {pipeline_mode = #tpu.pipeline_mode<synchronous>, transform_indices = @transform_3, window_bounds = array<i64: 256, 512>}, {pipeline_mode = #tpu.pipeline_mode<synchronous>, transform_indices = @transform_4, window_bounds = array<i64: 1, 512>}, {transform_indices = @transform_5, window_bounds = array<i64: 8, 512>}]} {
    %c0 = arith.constant 0 : index
    %c0_0 = arith.constant 0 : index
    %0 = vector.load %arg1[%c0, %c0_0] : memref<8x1024xf32, #tpu.memory_space<vmem>>, vector<8x1024xf32>
    %1 = arith.truncf %0 : vector<8x1024xf32> to vector<8x1024xbf16>
    %c0_1 = arith.constant 0 : index
    %c0_2 = arith.constant 0 : index
    %2 = vector.load %arg2[%c0_1, %c0_2] : memref<1024x256xbf16, #tpu.memory_space<vmem>>, vector<1024x256xbf16>
    %cst = arith.constant dense<0.000000e+00> : vector<8x256xf32>
    %3 = tpu.matmul %1, %2, %cst {dimension_numbers = #tpu.dot_dimension_numbers<[1], [0], [0], [1], [0, 0, 1, 1], [], []>} : vector<8x1024xbf16>, vector<1024x256xbf16>, vector<8x256xf32> -> vector<8x256xf32>
    %c0_3 = arith.constant 0 : index
    %c0_4 = arith.constant 0 : index
    %4 = vector.load %arg3[%c0_3, %c0_4] : memref<1x256xf32, #tpu.memory_space<vmem>>, vector<1x256xf32>
    %5 = vector.broadcast %4 : vector<1x256xf32> to vector<8x256xf32>
    %6 = arith.addf %3, %5 : vector<8x256xf32>
    %cst_5 = arith.constant 0.000000e+00 : f32
    %7 = vector.broadcast %cst_5 : f32 to vector<8x256xf32>
    %8 = arith.maximumf %6, %7 : vector<8x256xf32>
    %9 = arith.truncf %8 : vector<8x256xf32> to vector<8x256xbf16>
    %c0_6 = arith.constant 0 : index
    %c0_7 = arith.constant 0 : index
    %10 = vector.load %arg4[%c0_6, %c0_7] : memref<256x512xbf16, #tpu.memory_space<vmem>>, vector<256x512xbf16>
    %cst_8 = arith.constant dense<0.000000e+00> : vector<8x512xf32>
    %11 = tpu.matmul %9, %10, %cst_8 {dimension_numbers = #tpu.dot_dimension_numbers<[1], [0], [0], [1], [0, 0, 1, 1], [], []>} : vector<8x256xbf16>, vector<256x512xbf16>, vector<8x512xf32> -> vector<8x512xf32>
    %c0_9 = arith.constant 0 : index
    %c0_10 = arith.constant 0 : index
    %12 = vector.load %arg5[%c0_9, %c0_10] : memref<1x512xf32, #tpu.memory_space<vmem>>, vector<1x512xf32>
    %13 = vector.broadcast %12 : vector<1x512xf32> to vector<8x512xf32>
    %14 = arith.addf %11, %13 : vector<8x512xf32>
    %c0_11 = arith.constant 0 : index
    %c0_12 = arith.constant 0 : index
    %15 = vector.load %arg6[%c0_11, %c0_12] : memref<8x512xf32, #tpu.memory_space<vmem>>, vector<8x512xf32>
    tpu.vector_store %arg6[%c0_11, %c0_12], %14 {strides = array<i32>} : memref<8x512xf32, #tpu.memory_space<vmem>>, vector<8x512xf32>,
    return
  }
  func.func @transform_0(%arg0: i32) -> (i32, i32) {
    %c0_i32 = arith.constant 0 : i32
    %c0_i32_0 = arith.constant 0 : i32
    return %arg0, %c0_i32 : i32, i32
  }
  func.func @transform_1(%arg0: i32) -> (i32, i32) {
    %c0_i32 = arith.constant 0 : i32
    %c0_i32_0 = arith.constant 0 : i32
    %c0_i32_1 = arith.constant 0 : i32
    return %c0_i32, %c0_i32_0 : i32, i32
  }
  func.func @transform_2(%arg0: i32) -> (i32, i32) {
    %c0_i32 = arith.constant 0 : i32
    %c0_i32_0 = arith.constant 0 : i32
    %c0_i32_1 = arith.constant 0 : i32
    return %c0_i32, %c0_i32_0 : i32, i32
  }
  func.func @transform_3(%arg0: i32) -> (i32, i32) {
    %c0_i32 = arith.constant 0 : i32
    %c0_i32_0 = arith.constant 0 : i32
    %c0_i32_1 = arith.constant 0 : i32
    return %c0_i32, %c0_i32_0 : i32, i32
  }
  func.func @transform_4(%arg0: i32) -> (i32, i32) {
    %c0_i32 = arith.constant 0 : i32
    %c0_i32_0 = arith.constant 0 : i32
    %c0_i32_1 = arith.constant 0 : i32
    return %c0_i32, %c0_i32_0 : i32, i32
  }
  func.func @transform_5(%arg0: i32) -> (i32, i32) {
    %c0_i32 = arith.constant 0 : i32
    %c0_i32_0 = arith.constant 0 : i32
    return %arg0, %c0_i32 : i32, i32
  }
}

</mosaic_0001>

<llo_original>
// kernel: tpu_custom_call.1
$region0: #{tpu_custom_call.1}
  #allocation0 [shape = 'u32[]', space=smem, size = 0x4, offset = 0x4, fixed_abs, tag = 'smem constant byte address 0x4 - core index']
  #allocation1 [shape = 'u32[144,128]{1,0:T(1,128)}', space=vmem, size = 0x12000, scoped, tag = 'internal scratch']
  %s0 = inlined_call_operand.hbm [shape: f32[8,1024], index: 0, kind: input, shape index: {}]
  %s1 = inlined_call_operand.hbm [shape: bf16[1024,256], index: 1, kind: input, shape index: {}]
  %s2 = inlined_call_operand.vmem [shape: f32[1,256], index: 2, kind: input, shape index: {}]
  %s3 = inlined_call_operand.hbm [shape: bf16[256,512], index: 3, kind: input, shape index: {}]
  %s4 = inlined_call_operand.vmem [shape: f32[1,512], index: 4, kind: input, shape index: {}]
  %s5 = inlined_call_operand.hbm [shape: f32[8,512], index: 5, kind: output, shape index: {}]
  %s6 = sld [smem:[#allocation0]]
  $region42: #{tpu_custom_call.1} parent=0
    _
  %s8 = ssub.s32 1, %s6
  %s9 = scalar_select 0, %s8, %s6
  $region1: #{tpu_custom_call.1} parent=0
    #allocation2 [shape = 'u8[32768]{0}', space=vmem, size = 0x8000, scoped, tag = 'input window, operand 0, single buffered']
    #allocation3 [shape = 's32[1]{0}', space=sflag, size = 0x4, scoped, tag = 'scoped memory for tpu_custom_call.1']
    #allocation4 [shape = 's32[1]{0}', space=sflag, size = 0x4, scoped, tag = 'scoped memory for tpu_custom_call.1']
    #allocation5 [shape = 'u8[524288]{0}', space=vmem, size = 0x80000, scoped, tag = 'input window, operand 1, single buffered']
    #allocation6 [shape = 's32[1]{0}', space=sflag, size = 0x4, scoped, tag = 'scoped memory for tpu_custom_call.1']
    #allocation7 [shape = 'u8[262144]{0}', space=vmem, size = 0x40000, scoped, tag = 'input window, operand 3, single buffered']
    #allocation8 [shape = 'u8[16384]{0}', space=vmem, size = 0x4000, scoped, tag = 'output window, operand 0, single buffered']
    %10 = vsyncpa [#allocation3], 0
    %11 = vsyncpa [#allocation6], 0
    %12 = vsyncpa [#allocation4], 0
    // Predicated region
    $region2: #{tpu_custom_call.1} parent=1 // pred_check
      _
    $region3: #{tpu_custom_call.1} parent=1 // pred_check_branch
      %14 = sbr.rel (0) target = $region5
    $region4: #{tpu_custom_call.1} parent=1 // pred_region
      %s16 = ssub.s32 1024, 1024
      %17 = vsyncadd [#allocation3], %s16
      %s19 = sshll.u32 [#allocation2], 4
      %s20 = int_to_ptr.vmem [resolvable:$true] %s19
      %22 = dma.hbm_to_vmem [thread:$0]  %s0, 1024, %s20, [#allocation3]
    $region5: #{tpu_custom_call.1} parent=1 // pred_fallthru
      _
    // Predicated region
    $region6: #{tpu_custom_call.1} parent=1 // pred_check
      _
    $region7: #{tpu_custom_call.1} parent=1 // pred_check_branch
      %24 = sbr.rel (0) target = $region9
    $region8: #{tpu_custom_call.1} parent=1 // pred_region
      %s26 = ssub.s32 16384, 16384
      %27 = vsyncadd [#allocation6], %s26
      %s28 = sshll.u32 [#allocation5], 4
      %s29 = int_to_ptr.vmem [resolvable:$true] %s28
      %34 = dma.hbm_to_vmem [thread:$0]  %s1, 16384, %s29, [#allocation6], 128, 128, 8
    $region9: #{tpu_custom_call.1} parent=1 // pred_fallthru
      _
    // Predicated region
    $region10: #{tpu_custom_call.1} parent=1 // pred_check
      _
    $region11: #{tpu_custom_call.1} parent=1 // pred_check_branch
      %36 = sbr.rel (0) target = $region13
    $region12: #{tpu_custom_call.1} parent=1 // pred_region
      _
    $region13: #{tpu_custom_call.1} parent=1 // pred_fallthru
      _
    // Predicated region
    $region14: #{tpu_custom_call.1} parent=1 // pred_check
      _
    $region15: #{tpu_custom_call.1} parent=1 // pred_check_branch
      %38 = sbr.rel (0) target = $region17
    $region16: #{tpu_custom_call.1} parent=1 // pred_region
      %s40 = ssub.s32 8192, 8192
      %41 = vsyncadd [#allocation6], %s40
      %s42 = sshll.u32 [#allocation7], 4
      %s43 = int_to_ptr.vmem [resolvable:$true] %s42
      %48 = dma.hbm_to_vmem [thread:$0]  %s3, 8192, %s43, [#allocation6], 256, 256, 16
    $region17: #{tpu_custom_call.1} parent=1 // pred_fallthru
      _
    // Predicated region
    $region18: #{tpu_custom_call.1} parent=1 // pred_check
      _
    $region19: #{tpu_custom_call.1} parent=1 // pred_check_branch
      %50 = sbr.rel (0) target = $region21
    $region20: #{tpu_custom_call.1} parent=1 // pred_region
      _
    $region21: #{tpu_custom_call.1} parent=1 // pred_fallthru
      _
    // Predicated region
    $region22: #{tpu_custom_call.1} parent=1 // pred_check
      _
    $region23: #{tpu_custom_call.1} parent=1 // pred_check_branch
      %52 = sbr.rel (0) target = $region25
    $region24: #{tpu_custom_call.1} parent=1 // pred_region
      %53 = dma.done [#allocation3], 1024
    $region25: #{tpu_custom_call.1} parent=1 // pred_fallthru
      _
    // Predicated region
    $region26: #{tpu_custom_call.1} parent=1 // pred_check
      _
    $region27: #{tpu_custom_call.1} parent=1 // pred_check_branch
      %55 = sbr.rel (0) target = $region29
    $region28: #{tpu_custom_call.1} parent=1 // pred_region
      %56 = dma.done [#allocation6], 16384
    $region29: #{tpu_custom_call.1} parent=1 // pred_fallthru
      _
    // Predicated region
    $region30: #{tpu_custom_call.1} parent=1 // pred_check
      _
    $region31: #{tpu_custom_call.1} parent=1 // pred_check_branch
      %58 = sbr.rel (0) target = $region33
    $region32: #{tpu_custom_call.1} parent=1 // pred_region
      %59 = dma.done [#allocation6], 8192
    $region33: #{tpu_custom_call.1} parent=1 // pred_fallthru
      _
    %v60 = vld [vmem:[#allocation2] sm:$0xff]
    %v61 = vld [vmem:[#allocation2 + $0x8] sm:$0xff]
    %v62 = vld [vmem:[#allocation2 + $0x10] sm:$0xff]
    %v63 = vld [vmem:[#allocation2 + $0x18] sm:$0xff]
    %v64 = vld [vmem:[#allocation2 + $0x20] sm:$0xff]
    %v65 = vld [vmem:[#allocation2 + $0x28] sm:$0xff]
    %v66 = vld [vmem:[#allocation2 + $0x30] sm:$0xff]
    %v67 = vld [vmem:[#allocation2 + $0x38] sm:$0xff]
    %v68 = vpack.c.bf16 %v60, %v60
    %v69 = vpack.c.bf16 %v61, %v61
    %v70 = vpack.c.bf16 %v62, %v62
    %v71 = vpack.c.bf16 %v63, %v63
    %v72 = vpack.c.bf16 %v64, %v64
    %v73 = vpack.c.bf16 %v65, %v65
    %v74 = vpack.c.bf16 %v66, %v66
    %v75 = vpack.c.bf16 %v67, %v67
    %v76 = vld [vmem:[#allocation5] sm:$0xff]
    %v77 = vld [vmem:[#allocation5 + $0x8] sm:$0xff]
    %v78 = vld [vmem:[#allocation5 + $0x10] sm:$0xff]
    %v79 = vld [vmem:[#allocation5 + $0x18] sm:$0xff]
    %v80 = vld [vmem:[#allocation5 + $0x20] sm:$0xff]
    %v81 = vld [vmem:[#allocation5 + $0x28] sm:$0xff]
    %v82 = vld [vmem:[#allocation5 + $0x30] sm:$0xff]
    %v83 = vld [vmem:[#allocation5 + $0x38] sm:$0xff]
    %v84 = vld [vmem:[#allocation5 + $0x40] sm:$0xff]
    %v85 = vld [vmem:[#allocation5 + $0x48] sm:$0xff]
    %v86 = vld [vmem:[#allocation5 + $0x50] sm:$0xff]
    %v87 = vld [vmem:[#allocation5 + $0x58] sm:$0xff]
    %v88 = vld [vmem:[#allocation5 + $0x60] sm:$0xff]
    %v89 = vld [vmem:[#allocation5 + $0x68] sm:$0xff]
    %v90 = vld [vmem:[#allocation5 + $0x70] sm:$0xff]
    %v91 = vld [vmem:[#allocation5 + $0x78] sm:$0xff]
    %v92 = vld [vmem:[#allocation5 + $0x80] sm:$0xff]
    %v93 = vld [vmem:[#allocation5 + $0x88] sm:$0xff]
    %v94 = vld [vmem:[#allocation5 + $0x90] sm:$0xff]
    %v95 = vld [vmem:[#allocation5 + $0x98] sm:$0xff]
    %v96 = vld [vmem:[#allocation5 + $0xa0] sm:$0xff]
    %v97 = vld [vmem:[#allocation5 + $0xa8] sm:$0xff]
    %v98 = vld [vmem:[#allocation5 + $0xb0] sm:$0xff]
    %v99 = vld [vmem:[#allocation5 + $0xb8] sm:$0xff]
    %v100 = vld [vmem:[#allocation5 + $0xc0] sm:$0xff]
    %v101 = vld [vmem:[#allocation5 + $0xc8] sm:$0xff]
    %v102 = vld [vmem:[#allocation5 + $0xd0] sm:$0xff]
    %v103 = vld [vmem:[#allocation5 + $0xd8] sm:$0xff]
    %v104 = vld [vmem:[#allocation5 + $0xe0] sm:$0xff]
    %v105 = vld [vmem:[#allocation5 + $0xe8] sm:$0xff]
    %v106 = vld [vmem:[#allocation5 + $0xf0] sm:$0xff]
    %v107 = vld [vmem:[#allocation5 + $0xf8] sm:$0xff]
    %v108 = vld [vmem:[#allocation5 + $0x100] sm:$0xff]
    %v109 = vld [vmem:[#allocation5 + $0x108] sm:$0xff]
    %v110 = vld [vmem:[#allocation5 + $0x110] sm:$0xff]
    %v111 = vld [vmem:[#allocation5 + $0x118] sm:$0xff]
    %v112 = vld [vmem:[#allocation5 + $0x120] sm:$0xff]
    %v113 = vld [vmem:[#allocation5 + $0x128] sm:$0xff]
    %v114 = vld [vmem:[#allocation5 + $0x130] sm:$0xff]
    %v115 = vld [vmem:[#allocation5 + $0x138] sm:$0xff]
    %v116 = vld [vmem:[#allocation5 + $0x140] sm:$0xff]
    %v117 = vld [vmem:[#allocation5 + $0x148] sm:$0xff]
    %v118 = vld [vmem:[#allocation5 + $0x150] sm:$0xff]
    %v119 = vld [vmem:[#allocation5 + $0x158] sm:$0xff]
    %v120 = vld [vmem:[#allocation5 + $0x160] sm:$0xff]
    %v121 = vld [vmem:[#allocation5 + $0x168] sm:$0xff]
    %v122 = vld [vmem:[#allocation5 + $0x170] sm:$0xff]
    %v123 = vld [vmem:[#allocation5 + $0x178] sm:$0xff]
    %v124 = vld [vmem:[#allocation5 + $0x180] sm:$0xff]
    %v125 = vld [vmem:[#allocation5 + $0x188] sm:$0xff]
    %v126 = vld [vmem:[#allocation5 + $0x190] sm:$0xff]
    %v127 = vld [vmem:[#allocation5 + $0x198] sm:$0xff]
    %v128 = vld [vmem:[#allocation5 + $0x1a0] sm:$0xff]
    %v129 = vld [vmem:[#allocation5 + $0x1a8] sm:$0xff]
    %v130 = vld [vmem:[#allocation5 + $0x1b0] sm:$0xff]
    %v131 = vld [vmem:[#allocation5 + $0x1b8] sm:$0xff]
    %v132 = vld [vmem:[#allocation5 + $0x1c0] sm:$0xff]
    %v133 = vld [vmem:[#allocation5 + $0x1c8] sm:$0xff]
    %v134 = vld [vmem:[#allocation5 + $0x1d0] sm:$0xff]
    %v135 = vld [vmem:[#allocation5 + $0x1d8] sm:$0xff]
    %v136 = vld [vmem:[#allocation5 + $0x1e0] sm:$0xff]
    %v137 = vld [vmem:[#allocation5 + $0x1e8] sm:$0xff]
    %v138 = vld [vmem:[#allocation5 + $0x1f0] sm:$0xff]
    %v139 = vld [vmem:[#allocation5 + $0x1f8] sm:$0xff]
    %v140 = vld [vmem:[#allocation5 + $0x200] sm:$0xff]
    %v141 = vld [vmem:[#allocation5 + $0x208] sm:$0xff]
    %v142 = vld [vmem:[#allocation5 + $0x210] sm:$0xff]
    %v143 = vld [vmem:[#allocation5 + $0x218] sm:$0xff]
    %v144 = vld [vmem:[#allocation5 + $0x220] sm:$0xff]
    %v145 = vld [vmem:[#allocation5 + $0x228] sm:$0xff]
    %v146 = vld [vmem:[#allocation5 + $0x230] sm:$0xff]
    %v147 = vld [vmem:[#allocation5 + $0x238] sm:$0xff]
    %v148 = vld [vmem:[#allocation5 + $0x240] sm:$0xff]
    %v149 = vld [vmem:[#allocation5 + $0x248] sm:$0xff]
    %v150 = vld [vmem:[#allocation5 + $0x250] sm:$0xff]
    %v151 = vld [vmem:[#allocation5 + $0x258] sm:$0xff]
    %v152 = vld [vmem:[#allocation5 + $0x260] sm:$0xff]
    %v153 = vld [vmem:[#allocation5 + $0x268] sm:$0xff]
    %v154 = vld [vmem:[#allocation5 + $0x270] sm:$0xff]
    %v155 = vld [vmem:[#allocation5 + $0x278] sm:$0xff]
    %v156 = vld [vmem:[#allocation5 + $0x280] sm:$0xff]
    %v157 = vld [vmem:[#allocation5 + $0x288] sm:$0xff]
    %v158 = vld [vmem:[#allocation5 + $0x290] sm:$0xff]
    %v159 = vld [vmem:[#allocation5 + $0x298] sm:$0xff]
    %v160 = vld [vmem:[#allocation5 + $0x2a0] sm:$0xff]
    %v161 = vld [vmem:[#allocation5 + $0x2a8] sm:$0xff]
    %v162 = vld [vmem:[#allocation5 + $0x2b0] sm:$0xff]
    %v163 = vld [vmem:[#allocation5 + $0x2b8] sm:$0xff]
    %v164 = vld [vmem:[#allocation5 + $0x2c0] sm:$0xff]
    %v165 = vld [vmem:[#allocation5 + $0x2c8] sm:$0xff]
    %v166 = vld [vmem:[#allocation5 + $0x2d0] sm:$0xff]
    %v167 = vld [vmem:[#allocation5 + $0x2d8] sm:$0xff]
    %v168 = vld [vmem:[#allocation5 + $0x2e0] sm:$0xff]
    %v169 = vld [vmem:[#allocation5 + $0x2e8] sm:$0xff]
    %v170 = vld [vmem:[#allocation5 + $0x2f0] sm:$0xff]
    %v171 = vld [vmem:[#allocation5 + $0x2f8] sm:$0xff]
    %v172 = vld [vmem:[#allocation5 + $0x300] sm:$0xff]
    %v173 = vld [vmem:[#allocation5 + $0x308] sm:$0xff]
    %v174 = vld [vmem:[#allocation5 + $0x310] sm:$0xff]
    %v175 = vld [vmem:[#allocation5 + $0x318] sm:$0xff]
    %v176 = vld [vmem:[#allocation5 + $0x320] sm:$0xff]
    %v177 = vld [vmem:[#allocation5 + $0x328] sm:$0xff]
    %v178 = vld [vmem:[#allocation5 + $0x330] sm:$0xff]
    %v179 = vld [vmem:[#allocation5 + $0x338] sm:$0xff]
    %v180 = vld [vmem:[#allocation5 + $0x340] sm:$0xff]
    %v181 = vld [vmem:[#allocation5 + $0x348] sm:$0xff]
    %v182 = vld [vmem:[#allocation5 + $0x350] sm:$0xff]
    %v183 = vld [vmem:[#allocation5 + $0x358] sm:$0xff]
    %v184 = vld [vmem:[#allocation5 + $0x360] sm:$0xff]
    %v185 = vld [vmem:[#allocation5 + $0x368] sm:$0xff]
    %v186 = vld [vmem:[#allocation5 + $0x370] sm:$0xff]
    %v187 = vld [vmem:[#allocation5 + $0x378] sm:$0xff]
    %v188 = vld [vmem:[#allocation5 + $0x380] sm:$0xff]
    %v189 = vld [vmem:[#allocation5 + $0x388] sm:$0xff]
    %v190 = vld [vmem:[#allocation5 + $0x390] sm:$0xff]
    %v191 = vld [vmem:[#allocation5 + $0x398] sm:$0xff]
    %v192 = vld [vmem:[#allocation5 + $0x3a0] sm:$0xff]
    %v193 = vld [vmem:[#allocation5 + $0x3a8] sm:$0xff]
    %v194 = vld [vmem:[#allocation5 + $0x3b0] sm:$0xff]
    %v195 = vld [vmem:[#allocation5 + $0x3b8] sm:$0xff]
    %v196 = vld [vmem:[#allocation5 + $0x3c0] sm:$0xff]
    %v197 = vld [vmem:[#allocation5 + $0x3c8] sm:$0xff]
    %v198 = vld [vmem:[#allocation5 + $0x3d0] sm:$0xff]
    %v199 = vld [vmem:[#allocation5 + $0x3d8] sm:$0xff]
    %v200 = vld [vmem:[#allocation5 + $0x3e0] sm:$0xff]
    %v201 = vld [vmem:[#allocation5 + $0x3e8] sm:$0xff]
    %v202 = vld [vmem:[#allocation5 + $0x3f0] sm:$0xff]
    %v203 = vld [vmem:[#allocation5 + $0x3f8] sm:$0xff]
    %v204 = vld [vmem:[%s2] sm:$0x3]
    %v206 = vlaneseq
    %v207 = vshrl.u32 %v206, 7
    %v208 = vsub.s32 0, %v207
    %v209 = vrot.slane %v204, %v208
    %v210 = vlaneseq
    %v211 = vshrl.u32 %v210, 7
    %v212 = vsub.s32 1, %v211
    %v213 = vrot.slane %v204, %v212
    %v344 = vunpack.c.l.b16 %v76
    %v345 = vunpack.c.h.b16 %v76
    %v346 = vunpack.c.l.b16 %v77
    %v347 = vunpack.c.h.b16 %v77
    %v348 = vunpack.c.l.b16 %v78
    %v349 = vunpack.c.h.b16 %v78
    %v350 = vunpack.c.l.b16 %v79
    %v351 = vunpack.c.h.b16 %v79
    %v352 = vunpack.c.l.b16 %v80
    %v353 = vunpack.c.h.b16 %v80
    %v354 = vunpack.c.l.b16 %v81
    %v355 = vunpack.c.h.b16 %v81
    %v356 = vunpack.c.l.b16 %v82
    %v357 = vunpack.c.h.b16 %v82
    %v358 = vunpack.c.l.b16 %v83
    %v359 = vunpack.c.h.b16 %v83
    %v360 = vunpack.c.l.b16 %v84
    %v361 = vunpack.c.h.b16 %v84
    %v362 = vunpack.c.l.b16 %v85
    %v363 = vunpack.c.h.b16 %v85
    %v364 = vunpack.c.l.b16 %v86
    %v365 = vunpack.c.h.b16 %v86
    %v366 = vunpack.c.l.b16 %v87
    %v367 = vunpack.c.h.b16 %v87
    %v368 = vunpack.c.l.b16 %v88
    %v369 = vunpack.c.h.b16 %v88
    %v370 = vunpack.c.l.b16 %v89
    %v371 = vunpack.c.h.b16 %v89
    %v372 = vunpack.c.l.b16 %v90
    %v373 = vunpack.c.h.b16 %v90
    %v374 = vunpack.c.l.b16 %v91
    %v375 = vunpack.c.h.b16 %v91
    %v376 = vunpack.c.l.b16 %v92
    %v377 = vunpack.c.h.b16 %v92
    %v378 = vunpack.c.l.b16 %v93
    %v379 = vunpack.c.h.b16 %v93
    %v380 = vunpack.c.l.b16 %v94
    %v381 = vunpack.c.h.b16 %v94
    %v382 = vunpack.c.l.b16 %v95
    %v383 = vunpack.c.h.b16 %v95
    %v384 = vunpack.c.l.b16 %v96
    %v385 = vunpack.c.h.b16 %v96
    %v386 = vunpack.c.l.b16 %v97
    %v387 = vunpack.c.h.b16 %v97
    %v388 = vunpack.c.l.b16 %v98
    %v389 = vunpack.c.h.b16 %v98
    %v390 = vunpack.c.l.b16 %v99
    %v391 = vunpack.c.h.b16 %v99
    %v392 = vunpack.c.l.b16 %v100
    %v393 = vunpack.c.h.b16 %v100
    %v394 = vunpack.c.l.b16 %v101
    %v395 = vunpack.c.h.b16 %v101
    %v396 = vunpack.c.l.b16 %v102
    %v397 = vunpack.c.h.b16 %v102
    %v398 = vunpack.c.l.b16 %v103
    %v399 = vunpack.c.h.b16 %v103
    %v400 = vunpack.c.l.b16 %v104
    %v401 = vunpack.c.h.b16 %v104
    %v402 = vunpack.c.l.b16 %v105
    %v403 = vunpack.c.h.b16 %v105
    %v404 = vunpack.c.l.b16 %v106
    %v405 = vunpack.c.h.b16 %v106
    %v406 = vunpack.c.l.b16 %v107
    %v407 = vunpack.c.h.b16 %v107
    %v408 = vunpack.c.l.b16 %v108
    %v409 = vunpack.c.h.b16 %v108
    %v410 = vunpack.c.l.b16 %v109
    %v411 = vunpack.c.h.b16 %v109
    %v412 = vunpack.c.l.b16 %v110
    %v413 = vunpack.c.h.b16 %v110
    %v414 = vunpack.c.l.b16 %v111
    %v415 = vunpack.c.h.b16 %v111
    %v416 = vunpack.c.l.b16 %v112
    %v417 = vunpack.c.h.b16 %v112
    %v418 = vunpack.c.l.b16 %v113
    %v419 = vunpack.c.h.b16 %v113
    %v420 = vunpack.c.l.b16 %v114
    %v421 = vunpack.c.h.b16 %v114
    %v422 = vunpack.c.l.b16 %v115
    %v423 = vunpack.c.h.b16 %v115
    %v424 = vunpack.c.l.b16 %v116
    %v425 = vunpack.c.h.b16 %v116
    %v426 = vunpack.c.l.b16 %v117
    %v427 = vunpack.c.h.b16 %v117
    %v428 = vunpack.c.l.b16 %v118
    %v429 = vunpack.c.h.b16 %v118
    %v430 = vunpack.c.l.b16 %v119
    %v431 = vunpack.c.h.b16 %v119
    %v432 = vunpack.c.l.b16 %v120
    %v433 = vunpack.c.h.b16 %v120
    %v434 = vunpack.c.l.b16 %v121
    %v435 = vunpack.c.h.b16 %v121
    %v436 = vunpack.c.l.b16 %v122
    %v437 = vunpack.c.h.b16 %v122
    %v438 = vunpack.c.l.b16 %v123
    %v439 = vunpack.c.h.b16 %v123
    %v440 = vunpack.c.l.b16 %v124
    %v441 = vunpack.c.h.b16 %v124
    %v442 = vunpack.c.l.b16 %v125
    %v443 = vunpack.c.h.b16 %v125
    %v444 = vunpack.c.l.b16 %v126
    %v445 = vunpack.c.h.b16 %v126
    %v446 = vunpack.c.l.b16 %v127
    %v447 = vunpack.c.h.b16 %v127
    %v448 = vunpack.c.l.b16 %v128
    %v449 = vunpack.c.h.b16 %v128
    %v450 = vunpack.c.l.b16 %v129
    %v451 = vunpack.c.h.b16 %v129
    %v452 = vunpack.c.l.b16 %v130
    %v453 = vunpack.c.h.b16 %v130
    %v454 = vunpack.c.l.b16 %v131
    %v455 = vunpack.c.h.b16 %v131
    %v456 = vunpack.c.l.b16 %v132
    %v457 = vunpack.c.h.b16 %v132
    %v458 = vunpack.c.l.b16 %v133
    %v459 = vunpack.c.h.b16 %v133
    %v460 = vunpack.c.l.b16 %v134
    %v461 = vunpack.c.h.b16 %v134
    %v462 = vunpack.c.l.b16 %v135
    %v463 = vunpack.c.h.b16 %v135
    %v464 = vunpack.c.l.b16 %v136
    %v465 = vunpack.c.h.b16 %v136
    %v466 = vunpack.c.l.b16 %v137
    %v467 = vunpack.c.h.b16 %v137
    %v468 = vunpack.c.l.b16 %v138
    %v469 = vunpack.c.h.b16 %v138
    %v470 = vunpack.c.l.b16 %v139
    %v471 = vunpack.c.h.b16 %v139
    %v472 = vunpack.c.l.b16 %v140
    %v473 = vunpack.c.h.b16 %v140
    %v474 = vunpack.c.l.b16 %v141
    %v475 = vunpack.c.h.b16 %v141
    %v476 = vunpack.c.l.b16 %v142
    %v477 = vunpack.c.h.b16 %v142
    %v478 = vunpack.c.l.b16 %v143
    %v479 = vunpack.c.h.b16 %v143
    %v480 = vunpack.c.l.b16 %v144
    %v481 = vunpack.c.h.b16 %v144
    %v482 = vunpack.c.l.b16 %v145
    %v483 = vunpack.c.h.b16 %v145
    %v484 = vunpack.c.l.b16 %v146
    %v485 = vunpack.c.h.b16 %v146
    %v486 = vunpack.c.l.b16 %v147
    %v487 = vunpack.c.h.b16 %v147
    %v488 = vunpack.c.l.b16 %v148
    %v489 = vunpack.c.h.b16 %v148
    %v490 = vunpack.c.l.b16 %v149
    %v491 = vunpack.c.h.b16 %v149
    %v492 = vunpack.c.l.b16 %v150
    %v493 = vunpack.c.h.b16 %v150
    %v494 = vunpack.c.l.b16 %v151
    %v495 = vunpack.c.h.b16 %v151
    %v496 = vunpack.c.l.b16 %v152
    %v497 = vunpack.c.h.b16 %v152
    %v498 = vunpack.c.l.b16 %v153
    %v499 = vunpack.c.h.b16 %v153
    %v500 = vunpack.c.l.b16 %v154
    %v501 = vunpack.c.h.b16 %v154
    %v502 = vunpack.c.l.b16 %v155
    %v503 = vunpack.c.h.b16 %v155
    %v504 = vunpack.c.l.b16 %v156
    %v505 = vunpack.c.h.b16 %v156
    %v506 = vunpack.c.l.b16 %v157
    %v507 = vunpack.c.h.b16 %v157
    %v508 = vunpack.c.l.b16 %v158
    %v509 = vunpack.c.h.b16 %v158
    %v510 = vunpack.c.l.b16 %v159
    %v511 = vunpack.c.h.b16 %v159
    %v512 = vunpack.c.l.b16 %v160
    %v513 = vunpack.c.h.b16 %v160
    %v514 = vunpack.c.l.b16 %v161
    %v515 = vunpack.c.h.b16 %v161
    %v516 = vunpack.c.l.b16 %v162
    %v517 = vunpack.c.h.b16 %v162
    %v518 = vunpack.c.l.b16 %v163
    %v519 = vunpack.c.h.b16 %v163
    %v520 = vunpack.c.l.b16 %v164
    %v521 = vunpack.c.h.b16 %v164
    %v522 = vunpack.c.l.b16 %v165
    %v523 = vunpack.c.h.b16 %v165
    %v524 = vunpack.c.l.b16 %v166
    %v525 = vunpack.c.h.b16 %v166
    %v526 = vunpack.c.l.b16 %v167
    %v527 = vunpack.c.h.b16 %v167
    %v528 = vunpack.c.l.b16 %v168
    %v529 = vunpack.c.h.b16 %v168
    %v530 = vunpack.c.l.b16 %v169
    %v531 = vunpack.c.h.b16 %v169
    %v532 = vunpack.c.l.b16 %v170
    %v533 = vunpack.c.h.b16 %v170
    %v534 = vunpack.c.l.b16 %v171
    %v535 = vunpack.c.h.b16 %v171
    %v536 = vunpack.c.l.b16 %v172
    %v537 = vunpack.c.h.b16 %v172
    %v538 = vunpack.c.l.b16 %v173
    %v539 = vunpack.c.h.b16 %v173
    %v540 = vunpack.c.l.b16 %v174
    %v541 = vunpack.c.h.b16 %v174
    %v542 = vunpack.c.l.b16 %v175
    %v543 = vunpack.c.h.b16 %v175
    %v544 = vunpack.c.l.b16 %v176
    %v545 = vunpack.c.h.b16 %v176
    %v546 = vunpack.c.l.b16 %v177
    %v547 = vunpack.c.h.b16 %v177
    %v548 = vunpack.c.l.b16 %v178
    %v549 = vunpack.c.h.b16 %v178
    %v550 = vunpack.c.l.b16 %v179
    %v551 = vunpack.c.h.b16 %v179
    %v552 = vunpack.c.l.b16 %v180
    %v553 = vunpack.c.h.b16 %v180
    %v554 = vunpack.c.l.b16 %v181
    %v555 = vunpack.c.h.b16 %v181
    %v556 = vunpack.c.l.b16 %v182
    %v557 = vunpack.c.h.b16 %v182
    %v558 = vunpack.c.l.b16 %v183
    %v559 = vunpack.c.h.b16 %v183
    %v560 = vunpack.c.l.b16 %v184
    %v561 = vunpack.c.h.b16 %v184
    %v562 = vunpack.c.l.b16 %v185
    %v563 = vunpack.c.h.b16 %v185
    %v564 = vunpack.c.l.b16 %v186
    %v565 = vunpack.c.h.b16 %v186
    %v566 = vunpack.c.l.b16 %v187
    %v567 = vunpack.c.h.b16 %v187
    %v568 = vunpack.c.l.b16 %v188
    %v569 = vunpack.c.h.b16 %v188
    %v570 = vunpack.c.l.b16 %v189
    %v571 = vunpack.c.h.b16 %v189
    %v572 = vunpack.c.l.b16 %v190
    %v573 = vunpack.c.h.b16 %v190
    %v574 = vunpack.c.l.b16 %v191
    %v575 = vunpack.c.h.b16 %v191
    %v576 = vunpack.c.l.b16 %v192
    %v577 = vunpack.c.h.b16 %v192
    %v578 = vunpack.c.l.b16 %v193
    %v579 = vunpack.c.h.b16 %v193
    %v580 = vunpack.c.l.b16 %v194
    %v581 = vunpack.c.h.b16 %v194
    %v582 = vunpack.c.l.b16 %v195
    %v583 = vunpack.c.h.b16 %v195
    %v584 = vunpack.c.l.b16 %v196
    %v585 = vunpack.c.h.b16 %v196
    %v586 = vunpack.c.l.b16 %v197
    %v587 = vunpack.c.h.b16 %v197
    %v588 = vunpack.c.l.b16 %v198
    %v589 = vunpack.c.h.b16 %v198
    %v590 = vunpack.c.l.b16 %v199
    %v591 = vunpack.c.h.b16 %v199
    %v592 = vunpack.c.l.b16 %v200
    %v593 = vunpack.c.h.b16 %v200
    %v594 = vunpack.c.l.b16 %v201
    %v595 = vunpack.c.h.b16 %v201
    %v596 = vunpack.c.l.b16 %v202
    %v597 = vunpack.c.h.b16 %v202
    %v598 = vunpack.c.l.b16 %v203
    %v599 = vunpack.c.h.b16 %v203
    %v600 = vpack.c.b16 %v346, %v344
    %v601 = vpack.c.b16 %v347, %v345
    %v602 = vpack.c.b16 %v350, %v348
    %v603 = vpack.c.b16 %v351, %v349
    %v604 = vpack.c.b16 %v354, %v352
    %v605 = vpack.c.b16 %v355, %v353
    %v606 = vpack.c.b16 %v358, %v356
    %v607 = vpack.c.b16 %v359, %v357
    %v608 = vpack.c.b16 %v362, %v360
    %v609 = vpack.c.b16 %v363, %v361
    %v610 = vpack.c.b16 %v366, %v364
    %v611 = vpack.c.b16 %v367, %v365
    %v612 = vpack.c.b16 %v370, %v368
    %v613 = vpack.c.b16 %v371, %v369
    %v614 = vpack.c.b16 %v374, %v372
    %v615 = vpack.c.b16 %v375, %v373
    %v616 = vpack.c.b16 %v378, %v376
    %v617 = vpack.c.b16 %v379, %v377
    %v618 = vpack.c.b16 %v382, %v380
    %v619 = vpack.c.b16 %v383, %v381
    %v620 = vpack.c.b16 %v386, %v384
    %v621 = vpack.c.b16 %v387, %v385
    %v622 = vpack.c.b16 %v390, %v388
    %v623 = vpack.c.b16 %v391, %v389
    %v624 = vpack.c.b16 %v394, %v392
    %v625 = vpack.c.b16 %v395, %v393
    %v626 = vpack.c.b16 %v398, %v396
    %v627 = vpack.c.b16 %v399, %v397
    %v628 = vpack.c.b16 %v402, %v400
    %v629 = vpack.c.b16 %v403, %v401
    %v630 = vpack.c.b16 %v406, %v404
    %v631 = vpack.c.b16 %v407, %v405
    %v632 = vpack.c.b16 %v410, %v408
    %v633 = vpack.c.b16 %v411, %v409
    %v634 = vpack.c.b16 %v414, %v412
    %v635 = vpack.c.b16 %v415, %v413
    %v636 = vpack.c.b16 %v418, %v416
    %v637 = vpack.c.b16 %v419, %v417
    %v638 = vpack.c.b16 %v422, %v420
    %v639 = vpack.c.b16 %v423, %v421
    %v640 = vpack.c.b16 %v426, %v424
    %v641 = vpack.c.b16 %v427, %v425
    %v642 = vpack.c.b16 %v430, %v428
    %v643 = vpack.c.b16 %v431, %v429
    %v644 = vpack.c.b16 %v434, %v432
    %v645 = vpack.c.b16 %v435, %v433
    %v646 = vpack.c.b16 %v438, %v436
    %v647 = vpack.c.b16 %v439, %v437
    %v648 = vpack.c.b16 %v442, %v440
    %v649 = vpack.c.b16 %v443, %v441
    %v650 = vpack.c.b16 %v446, %v444
    %v651 = vpack.c.b16 %v447, %v445
    %v652 = vpack.c.b16 %v450, %v448
    %v653 = vpack.c.b16 %v451, %v449
    %v654 = vpack.c.b16 %v454, %v452
    %v655 = vpack.c.b16 %v455, %v453
    %v656 = vpack.c.b16 %v458, %v456
    %v657 = vpack.c.b16 %v459, %v457
    %v658 = vpack.c.b16 %v462, %v460
    %v659 = vpack.c.b16 %v463, %v461
    %v660 = vpack.c.b16 %v466, %v464
    %v661 = vpack.c.b16 %v467, %v465
    %v662 = vpack.c.b16 %v470, %v468
    %v663 = vpack.c.b16 %v471, %v469
    %v664 = vpack.c.b16 %v474, %v472
    %v665 = vpack.c.b16 %v475, %v473
    %v666 = vpack.c.b16 %v478, %v476
    %v667 = vpack.c.b16 %v479, %v477
    %v668 = vpack.c.b16 %v482, %v480
    %v669 = vpack.c.b16 %v483, %v481
    %v670 = vpack.c.b16 %v486, %v484
    %v671 = vpack.c.b16 %v487, %v485
    %v672 = vpack.c.b16 %v490, %v488
    %v673 = vpack.c.b16 %v491, %v489
    %v674 = vpack.c.b16 %v494, %v492
    %v675 = vpack.c.b16 %v495, %v493
    %v676 = vpack.c.b16 %v498, %v496
    %v677 = vpack.c.b16 %v499, %v497
    %v678 = vpack.c.b16 %v502, %v500
    %v679 = vpack.c.b16 %v503, %v501
    %v680 = vpack.c.b16 %v506, %v504
    %v681 = vpack.c.b16 %v507, %v505
    %v682 = vpack.c.b16 %v510, %v508
    %v683 = vpack.c.b16 %v511, %v509
    %v684 = vpack.c.b16 %v514, %v512
    %v685 = vpack.c.b16 %v515, %v513
    %v686 = vpack.c.b16 %v518, %v516
    %v687 = vpack.c.b16 %v519, %v517
    %v688 = vpack.c.b16 %v522, %v520
    %v689 = vpack.c.b16 %v523, %v521
    %v690 = vpack.c.b16 %v526, %v524
    %v691 = vpack.c.b16 %v527, %v525
    %v692 = vpack.c.b16 %v530, %v528
    %v693 = vpack.c.b16 %v531, %v529
    %v694 = vpack.c.b16 %v534, %v532
    %v695 = vpack.c.b16 %v535, %v533
    %v696 = vpack.c.b16 %v538, %v536
    %v697 = vpack.c.b16 %v539, %v537
    %v698 = vpack.c.b16 %v542, %v540
    %v699 = vpack.c.b16 %v543, %v541
    %v700 = vpack.c.b16 %v546, %v544
    %v701 = vpack.c.b16 %v547, %v545
    %v702 = vpack.c.b16 %v550, %v548
    %v703 = vpack.c.b16 %v551, %v549
    %v704 = vpack.c.b16 %v554, %v552
    %v705 = vpack.c.b16 %v555, %v553
    %v706 = vpack.c.b16 %v558, %v556
    %v707 = vpack.c.b16 %v559, %v557
    %v708 = vpack.c.b16 %v562, %v560
    %v709 = vpack.c.b16 %v563, %v561
    %v710 = vpack.c.b16 %v566, %v564
    %v711 = vpack.c.b16 %v567, %v565
    %v712 = vpack.c.b16 %v570, %v568
    %v713 = vpack.c.b16 %v571, %v569
    %v714 = vpack.c.b16 %v574, %v572
    %v715 = vpack.c.b16 %v575, %v573
    %v716 = vpack.c.b16 %v578, %v576
    %v717 = vpack.c.b16 %v579, %v577
    %v718 = vpack.c.b16 %v582, %v580
    %v719 = vpack.c.b16 %v583, %v581
    %v720 = vpack.c.b16 %v586, %v584
    %v721 = vpack.c.b16 %v587, %v585
    %v722 = vpack.c.b16 %v590, %v588
    %v723 = vpack.c.b16 %v591, %v589
    %v724 = vpack.c.b16 %v594, %v592
    %v725 = vpack.c.b16 %v595, %v593
    %v726 = vpack.c.b16 %v598, %v596
    %v727 = vpack.c.b16 %v599, %v597
    %856 = vmatprep.subr.bf16.mxu0 %v601
    %857 = vmatpush1.bf16.msra.mxu0 %v600
    %858 = vmatprep.subr.bf16.mxu0 %v603
    %859 = vmatpush1.bf16.msra.mxu0 %v602
    %860 = vmatprep.subr.bf16.mxu0 %v605
    %861 = vmatpush1.bf16.msra.mxu0 %v604
    %862 = vmatprep.subr.bf16.mxu0 %v607
    %863 = vmatpush1.bf16.msra.mxu0 %v606
    %864 = vmatprep.subr.bf16.mxu0 %v609
    %865 = vmatpush1.bf16.msra.mxu0 %v608
    %866 = vmatprep.subr.bf16.mxu0 %v611
    %867 = vmatpush1.bf16.msra.mxu0 %v610
    %868 = vmatprep.subr.bf16.mxu0 %v613
    %869 = vmatpush1.bf16.msra.mxu0 %v612
    %870 = vmatprep.subr.bf16.mxu0 %v615
    %871 = vmatpush1.bf16.msra.mxu0 %v614
    %872 = vmatprep.subr.bf16.mxu0 %v617
    %873 = vmatpush1.bf16.msra.mxu0 %v616
    %874 = vmatprep.subr.bf16.mxu0 %v619
    %875 = vmatpush1.bf16.msra.mxu0 %v618
    %876 = vmatprep.subr.bf16.mxu0 %v621
    %877 = vmatpush1.bf16.msra.mxu0 %v620
    %878 = vmatprep.subr.bf16.mxu0 %v623
    %879 = vmatpush1.bf16.msra.mxu0 %v622
    %880 = vmatprep.subr.bf16.mxu0 %v625
    %881 = vmatpush1.bf16.msra.mxu0 %v624
    %882 = vmatprep.subr.bf16.mxu0 %v627
    %883 = vmatpush1.bf16.msra.mxu0 %v626
    %884 = vmatprep.subr.bf16.mxu0 %v629
    %885 = vmatpush1.bf16.msra.mxu0 %v628
    %886 = vmatprep.subr.bf16.mxu0 %v631
    %887 = vmatpush1.bf16.msra.mxu0 %v630
    %888 = vmatprep.mubr.bf16.mxu0 %v69
    %889 = vmatmul.mubr.bf16.gmra.mrb[0].mxu0 %v68
    %v890 = vpop.f32.mrb[0].mxu0
    %v891 = vadd.f32 %v209, %v890
    %v892 = vpop.f32.mrb[0].mxu0
    %v893 = vadd.f32 %v213, %v892
    %v894 = vpop.f32.mrb[0].mxu0
    %v895 = vpop.f32.mrb[0].mxu0
    %896 = vdwg.mxu0
    %897 = vmatprep.subr.bf16.mxu0 %v633
    %898 = vmatpush1.bf16.msra.mxu0 %v632
    %899 = vmatprep.subr.bf16.mxu0 %v635
    %900 = vmatpush1.bf16.msra.mxu0 %v634
    %901 = vmatprep.subr.bf16.mxu0 %v637
    %902 = vmatpush1.bf16.msra.mxu0 %v636
    %903 = vmatprep.subr.bf16.mxu0 %v639
    %904 = vmatpush1.bf16.msra.mxu0 %v638
    %905 = vmatprep.subr.bf16.mxu0 %v641
    %906 = vmatpush1.bf16.msra.mxu0 %v640
    %907 = vmatprep.subr.bf16.mxu0 %v643
    %908 = vmatpush1.bf16.msra.mxu0 %v642
    %909 = vmatprep.subr.bf16.mxu0 %v645
    %910 = vmatpush1.bf16.msra.mxu0 %v644
    %911 = vmatprep.subr.bf16.mxu0 %v647
    %912 = vmatpush1.bf16.msra.mxu0 %v646
    %913 = vmatprep.subr.bf16.mxu0 %v649
    %914 = vmatpush1.bf16.msra.mxu0 %v648
    %915 = vmatprep.subr.bf16.mxu0 %v651
    %916 = vmatpush1.bf16.msra.mxu0 %v650
    %917 = vmatprep.subr.bf16.mxu0 %v653
    %918 = vmatpush1.bf16.msra.mxu0 %v652
    %919 = vmatprep.subr.bf16.mxu0 %v655
    %920 = vmatpush1.bf16.msra.mxu0 %v654
    %921 = vmatprep.subr.bf16.mxu0 %v657
    %922 = vmatpush1.bf16.msra.mxu0 %v656
    %923 = vmatprep.subr.bf16.mxu0 %v659
    %924 = vmatpush1.bf16.msra.mxu0 %v658
    %925 = vmatprep.subr.bf16.mxu0 %v661
    %926 = vmatpush1.bf16.msra.mxu0 %v660
    %927 = vmatprep.subr.bf16.mxu0 %v663
    %928 = vmatpush1.bf16.msra.mxu0 %v662
    %929 = vmatprep.mubr.bf16.mxu0 %v71
    %930 = vmatmul.mubr.bf16.gmra.mrb[0].mxu0 %v70
    %v931 = vpop.f32.mrb[0].mxu0
    %v932 = vadd.f32 %v891, %v931
    %v933 = vpop.f32.mrb[0].mxu0
    %v934 = vadd.f32 %v893, %v933
    %v935 = vpop.f32.mrb[0].mxu0
    %v936 = vpop.f32.mrb[0].mxu0
    %937 = vdwg.mxu0
    %938 = vmatprep.subr.bf16.mxu0 %v665
    %939 = vmatpush1.bf16.msra.mxu0 %v664
    %940 = vmatprep.subr.bf16.mxu0 %v667
    %941 = vmatpush1.bf16.msra.mxu0 %v666
    %942 = vmatprep.subr.bf16.mxu0 %v669
    %943 = vmatpush1.bf16.msra.mxu0 %v668
    %944 = vmatprep.subr.bf16.mxu0 %v671
    %945 = vmatpush1.bf16.msra.mxu0 %v670
    %946 = vmatprep.subr.bf16.mxu0 %v673
    %947 = vmatpush1.bf16.msra.mxu0 %v672
    %948 = vmatprep.subr.bf16.mxu0 %v675
    %949 = vmatpush1.bf16.msra.mxu0 %v674
    %950 = vmatprep.subr.bf16.mxu0 %v677
    %951 = vmatpush1.bf16.msra.mxu0 %v676
    %952 = vmatprep.subr.bf16.mxu0 %v679
    %953 = vmatpush1.bf16.msra.mxu0 %v678
    %954 = vmatprep.subr.bf16.mxu0 %v681
    %955 = vmatpush1.bf16.msra.mxu0 %v680
    %956 = vmatprep.subr.bf16.mxu0 %v683
    %957 = vmatpush1.bf16.msra.mxu0 %v682
    %958 = vmatprep.subr.bf16.mxu0 %v685
    %959 = vmatpush1.bf16.msra.mxu0 %v684
    %960 = vmatprep.subr.bf16.mxu0 %v687
    %961 = vmatpush1.bf16.msra.mxu0 %v686
    %962 = vmatprep.subr.bf16.mxu0 %v689
    %963 = vmatpush1.bf16.msra.mxu0 %v688
    %964 = vmatprep.subr.bf16.mxu0 %v691
    %965 = vmatpush1.bf16.msra.mxu0 %v690
    %966 = vmatprep.subr.bf16.mxu0 %v693
    %967 = vmatpush1.bf16.msra.mxu0 %v692
    %968 = vmatprep.subr.bf16.mxu0 %v695
    %969 = vmatpush1.bf16.msra.mxu0 %v694
    %970 = vmatprep.mubr.bf16.mxu0 %v73
    %971 = vmatmul.mubr.bf16.gmra.mrb[0].mxu0 %v72
    %v972 = vpop.f32.mrb[0].mxu0
    %v973 = vadd.f32 %v932, %v972
    %v974 = vpop.f32.mrb[0].mxu0
    %v975 = vadd.f32 %v934, %v974
    %v976 = vpop.f32.mrb[0].mxu0
    %v977 = vpop.f32.mrb[0].mxu0
    %978 = vdwg.mxu0
    %979 = vmatprep.subr.bf16.mxu0 %v697
    %980 = vmatpush1.bf16.msra.mxu0 %v696
    %981 = vmatprep.subr.bf16.mxu0 %v699
    %982 = vmatpush1.bf16.msra.mxu0 %v698
    %983 = vmatprep.subr.bf16.mxu0 %v701
    %984 = vmatpush1.bf16.msra.mxu0 %v700
    %985 = vmatprep.subr.bf16.mxu0 %v703
    %986 = vmatpush1.bf16.msra.mxu0 %v702
    %987 = vmatprep.subr.bf16.mxu0 %v705
    %988 = vmatpush1.bf16.msra.mxu0 %v704
    %989 = vmatprep.subr.bf16.mxu0 %v707
    %990 = vmatpush1.bf16.msra.mxu0 %v706
    %991 = vmatprep.subr.bf16.mxu0 %v709
    %992 = vmatpush1.bf16.msra.mxu0 %v708
    %993 = vmatprep.subr.bf16.mxu0 %v711
    %994 = vmatpush1.bf16.msra.mxu0 %v710
    %995 = vmatprep.subr.bf16.mxu0 %v713
    %996 = vmatpush1.bf16.msra.mxu0 %v712
    %997 = vmatprep.subr.bf16.mxu0 %v715
    %998 = vmatpush1.bf16.msra.mxu0 %v714
    %999 = vmatprep.subr.bf16.mxu0 %v717
    %1000 = vmatpush1.bf16.msra.mxu0 %v716
    %1001 = vmatprep.subr.bf16.mxu0 %v719
    %1002 = vmatpush1.bf16.msra.mxu0 %v718
    %1003 = vmatprep.subr.bf16.mxu0 %v721
    %1004 = vmatpush1.bf16.msra.mxu0 %v720
    %1005 = vmatprep.subr.bf16.mxu0 %v723
    %1006 = vmatpush1.bf16.msra.mxu0 %v722
    %1007 = vmatprep.subr.bf16.mxu0 %v725
    %1008 = vmatpush1.bf16.msra.mxu0 %v724
    %1009 = vmatprep.subr.bf16.mxu0 %v727
    %1010 = vmatpush1.bf16.msra.mxu0 %v726
    %1011 = vmatprep.mubr.bf16.mxu0 %v75
    %1012 = vmatmul.mubr.bf16.gmra.mrb[0].mxu0 %v74
    %v1013 = vpop.f32.mrb[0].mxu0
    %v1014 = vadd.f32 %v973, %v1013
    %v1015 = vpop.f32.mrb[0].mxu0
    %v1016 = vadd.f32 %v975, %v1015
    %v1017 = vpop.f32.mrb[0].mxu0
    %v1018 = vpop.f32.mrb[0].mxu0
    %1019 = vdwg.mxu0
    %v1020 = vmax.f32 %v1014, 0.0
    %v1021 = vmax.f32 %v1016, 0.0
    %v1022 = vpack.c.bf16 %v1020, %v1020
    %v1023 = vpack.c.bf16 %v1021, %v1021
    %v1024 = vld [vmem:[#allocation7] sm:$0xff]
    %v1025 = vld [vmem:[#allocation7 + $0x8] sm:$0xff]
    %v1026 = vld [vmem:[#allocation7 + $0x10] sm:$0xff]
    %v1027 = vld [vmem:[#allocation7 + $0x18] sm:$0xff]
    %v1028 = vld [vmem:[#allocation7 + $0x20] sm:$0xff]
    %v1029 = vld [vmem:[#allocation7 + $0x28] sm:$0xff]
    %v1030 = vld [vmem:[#allocation7 + $0x30] sm:$0xff]
    %v1031 = vld [vmem:[#allocation7 + $0x38] sm:$0xff]
    %v1032 = vld [vmem:[#allocation7 + $0x40] sm:$0xff]
    %v1033 = vld [vmem:[#allocation7 + $0x48] sm:$0xff]
    %v1034 = vld [vmem:[#allocation7 + $0x50] sm:$0xff]
    %v1035 = vld [vmem:[#allocation7 + $0x58] sm:$0xff]
    %v1036 = vld [vmem:[#allocation7 + $0x60] sm:$0xff]
    %v1037 = vld [vmem:[#allocation7 + $0x68] sm:$0xff]
    %v1038 = vld [vmem:[#allocation7 + $0x70] sm:$0xff]
    %v1039 = vld [vmem:[#allocation7 + $0x78] sm:$0xff]
    %v1040 = vld [vmem:[#allocation7 + $0x80] sm:$0xff]
    %v1041 = vld [vmem:[#allocation7 + $0x88] sm:$0xff]
    %v1042 = vld [vmem:[#allocation7 + $0x90] sm:$0xff]
    %v1043 = vld [vmem:[#allocation7 + $0x98] sm:$0xff]
    %v1044 = vld [vmem:[#allocation7 + $0xa0] sm:$0xff]
    %v1045 = vld [vmem:[#allocation7 + $0xa8] sm:$0xff]
    %v1046 = vld [vmem:[#allocation7 + $0xb0] sm:$0xff]
    %v1047 = vld [vmem:[#allocation7 + $0xb8] sm:$0xff]
    %v1048 = vld [vmem:[#allocation7 + $0xc0] sm:$0xff]
    %v1049 = vld [vmem:[#allocation7 + $0xc8] sm:$0xff]
    %v1050 = vld [vmem:[#allocation7 + $0xd0] sm:$0xff]
    %v1051 = vld [vmem:[#allocation7 + $0xd8] sm:$0xff]
    %v1052 = vld [vmem:[#allocation7 + $0xe0] sm:$0xff]
    %v1053 = vld [vmem:[#allocation7 + $0xe8] sm:$0xff]
    %v1054 = vld [vmem:[#allocation7 + $0xf0] sm:$0xff]
    %v1055 = vld [vmem:[#allocation7 + $0xf8] sm:$0xff]
    %v1056 = vld [vmem:[#allocation7 + $0x100] sm:$0xff]
    %v1057 = vld [vmem:[#allocation7 + $0x108] sm:$0xff]
    %v1058 = vld [vmem:[#allocation7 + $0x110] sm:$0xff]
    %v1059 = vld [vmem:[#allocation7 + $0x118] sm:$0xff]
    %v1060 = vld [vmem:[#allocation7 + $0x120] sm:$0xff]
    %v1061 = vld [vmem:[#allocation7 + $0x128] sm:$0xff]
    %v1062 = vld [vmem:[#allocation7 + $0x130] sm:$0xff]
    %v1063 = vld [vmem:[#allocation7 + $0x138] sm:$0xff]
    %v1064 = vld [vmem:[#allocation7 + $0x140] sm:$0xff]
    %v1065 = vld [vmem:[#allocation7 + $0x148] sm:$0xff]
    %v1066 = vld [vmem:[#allocation7 + $0x150] sm:$0xff]
    %v1067 = vld [vmem:[#allocation7 + $0x158] sm:$0xff]
    %v1068 = vld [vmem:[#allocation7 + $0x160] sm:$0xff]
    %v1069 = vld [vmem:[#allocation7 + $0x168] sm:$0xff]
    %v1070 = vld [vmem:[#allocation7 + $0x170] sm:$0xff]
    %v1071 = vld [vmem:[#allocation7 + $0x178] sm:$0xff]
    %v1072 = vld [vmem:[#allocation7 + $0x180] sm:$0xff]
    %v1073 = vld [vmem:[#allocation7 + $0x188] sm:$0xff]
    %v1074 = vld [vmem:[#allocation7 + $0x190] sm:$0xff]
    %v1075 = vld [vmem:[#allocation7 + $0x198] sm:$0xff]
    %v1076 = vld [vmem:[#allocation7 + $0x1a0] sm:$0xff]
    %v1077 = vld [vmem:[#allocation7 + $0x1a8] sm:$0xff]
    %v1078 = vld [vmem:[#allocation7 + $0x1b0] sm:$0xff]
    %v1079 = vld [vmem:[#allocation7 + $0x1b8] sm:$0xff]
    %v1080 = vld [vmem:[#allocation7 + $0x1c0] sm:$0xff]
    %v1081 = vld [vmem:[#allocation7 + $0x1c8] sm:$0xff]
    %v1082 = vld [vmem:[#allocation7 + $0x1d0] sm:$0xff]
    %v1083 = vld [vmem:[#allocation7 + $0x1d8] sm:$0xff]
    %v1084 = vld [vmem:[#allocation7 + $0x1e0] sm:$0xff]
    %v1085 = vld [vmem:[#allocation7 + $0x1e8] sm:$0xff]
    %v1086 = vld [vmem:[#allocation7 + $0x1f0] sm:$0xff]
    %v1087 = vld [vmem:[#allocation7 + $0x1f8] sm:$0xff]
    %v1088 = vld [vmem:[%s4] sm:$0xf]
    %v1090 = vlaneseq
    %v1091 = vshrl.u32 %v1090, 7
    %v1092 = vsub.s32 0, %v1091
    %v1093 = vrot.slane %v1088, %v1092
    %v1094 = vlaneseq
    %v1095 = vshrl.u32 %v1094, 7
    %v1096 = vsub.s32 1, %v1095
    %v1097 = vrot.slane %v1088, %v1096
    %v1098 = vlaneseq
    %v1099 = vshrl.u32 %v1098, 7
    %v1100 = vsub.s32 2, %v1099
    %v1101 = vrot.slane %v1088, %v1100
    %v1102 = vlaneseq
    %v1103 = vshrl.u32 %v1102, 7
    %v1104 = vsub.s32 3, %v1103
    %v1105 = vrot.slane %v1088, %v1104
    %v1174 = vunpack.c.l.b16 %v1024
    %v1175 = vunpack.c.h.b16 %v1024
    %v1176 = vunpack.c.l.b16 %v1025
    %v1177 = vunpack.c.h.b16 %v1025
    %v1178 = vunpack.c.l.b16 %v1026
    %v1179 = vunpack.c.h.b16 %v1026
    %v1180 = vunpack.c.l.b16 %v1027
    %v1181 = vunpack.c.h.b16 %v1027
    %v1182 = vunpack.c.l.b16 %v1028
    %v1183 = vunpack.c.h.b16 %v1028
    %v1184 = vunpack.c.l.b16 %v1029
    %v1185 = vunpack.c.h.b16 %v1029
    %v1186 = vunpack.c.l.b16 %v1030
    %v1187 = vunpack.c.h.b16 %v1030
    %v1188 = vunpack.c.l.b16 %v1031
    %v1189 = vunpack.c.h.b16 %v1031
    %v1190 = vunpack.c.l.b16 %v1032
    %v1191 = vunpack.c.h.b16 %v1032
    %v1192 = vunpack.c.l.b16 %v1033
    %v1193 = vunpack.c.h.b16 %v1033
    %v1194 = vunpack.c.l.b16 %v1034
    %v1195 = vunpack.c.h.b16 %v1034
    %v1196 = vunpack.c.l.b16 %v1035
    %v1197 = vunpack.c.h.b16 %v1035
    %v1198 = vunpack.c.l.b16 %v1036
    %v1199 = vunpack.c.h.b16 %v1036
    %v1200 = vunpack.c.l.b16 %v1037
    %v1201 = vunpack.c.h.b16 %v1037
    %v1202 = vunpack.c.l.b16 %v1038
    %v1203 = vunpack.c.h.b16 %v1038
    %v1204 = vunpack.c.l.b16 %v1039
    %v1205 = vunpack.c.h.b16 %v1039
    %v1206 = vunpack.c.l.b16 %v1040
    %v1207 = vunpack.c.h.b16 %v1040
    %v1208 = vunpack.c.l.b16 %v1041
    %v1209 = vunpack.c.h.b16 %v1041
    %v1210 = vunpack.c.l.b16 %v1042
    %v1211 = vunpack.c.h.b16 %v1042
    %v1212 = vunpack.c.l.b16 %v1043
    %v1213 = vunpack.c.h.b16 %v1043
    %v1214 = vunpack.c.l.b16 %v1044
    %v1215 = vunpack.c.h.b16 %v1044
    %v1216 = vunpack.c.l.b16 %v1045
    %v1217 = vunpack.c.h.b16 %v1045
    %v1218 = vunpack.c.l.b16 %v1046
    %v1219 = vunpack.c.h.b16 %v1046
    %v1220 = vunpack.c.l.b16 %v1047
    %v1221 = vunpack.c.h.b16 %v1047
    %v1222 = vunpack.c.l.b16 %v1048
    %v1223 = vunpack.c.h.b16 %v1048
    %v1224 = vunpack.c.l.b16 %v1049
    %v1225 = vunpack.c.h.b16 %v1049
    %v1226 = vunpack.c.l.b16 %v1050
    %v1227 = vunpack.c.h.b16 %v1050
    %v1228 = vunpack.c.l.b16 %v1051
    %v1229 = vunpack.c.h.b16 %v1051
    %v1230 = vunpack.c.l.b16 %v1052
    %v1231 = vunpack.c.h.b16 %v1052
    %v1232 = vunpack.c.l.b16 %v1053
    %v1233 = vunpack.c.h.b16 %v1053
    %v1234 = vunpack.c.l.b16 %v1054
    %v1235 = vunpack.c.h.b16 %v1054
    %v1236 = vunpack.c.l.b16 %v1055
    %v1237 = vunpack.c.h.b16 %v1055
    %v1238 = vunpack.c.l.b16 %v1056
    %v1239 = vunpack.c.h.b16 %v1056
    %v1240 = vunpack.c.l.b16 %v1057
    %v1241 = vunpack.c.h.b16 %v1057
    %v1242 = vunpack.c.l.b16 %v1058
    %v1243 = vunpack.c.h.b16 %v1058
    %v1244 = vunpack.c.l.b16 %v1059
    %v1245 = vunpack.c.h.b16 %v1059
    %v1246 = vunpack.c.l.b16 %v1060
    %v1247 = vunpack.c.h.b16 %v1060
    %v1248 = vunpack.c.l.b16 %v1061
    %v1249 = vunpack.c.h.b16 %v1061
    %v1250 = vunpack.c.l.b16 %v1062
    %v1251 = vunpack.c.h.b16 %v1062
    %v1252 = vunpack.c.l.b16 %v1063
    %v1253 = vunpack.c.h.b16 %v1063
    %v1254 = vunpack.c.l.b16 %v1064
    %v1255 = vunpack.c.h.b16 %v1064
    %v1256 = vunpack.c.l.b16 %v1065
    %v1257 = vunpack.c.h.b16 %v1065
    %v1258 = vunpack.c.l.b16 %v1066
    %v1259 = vunpack.c.h.b16 %v1066
    %v1260 = vunpack.c.l.b16 %v1067
    %v1261 = vunpack.c.h.b16 %v1067
    %v1262 = vunpack.c.l.b16 %v1068
    %v1263 = vunpack.c.h.b16 %v1068
    %v1264 = vunpack.c.l.b16 %v1069
    %v1265 = vunpack.c.h.b16 %v1069
    %v1266 = vunpack.c.l.b16 %v1070
    %v1267 = vunpack.c.h.b16 %v1070
    %v1268 = vunpack.c.l.b16 %v1071
    %v1269 = vunpack.c.h.b16 %v1071
    %v1270 = vunpack.c.l.b16 %v1072
    %v1271 = vunpack.c.h.b16 %v1072
    %v1272 = vunpack.c.l.b16 %v1073
    %v1273 = vunpack.c.h.b16 %v1073
    %v1274 = vunpack.c.l.b16 %v1074
    %v1275 = vunpack.c.h.b16 %v1074
    %v1276 = vunpack.c.l.b16 %v1075
    %v1277 = vunpack.c.h.b16 %v1075
    %v1278 = vunpack.c.l.b16 %v1076
    %v1279 = vunpack.c.h.b16 %v1076
    %v1280 = vunpack.c.l.b16 %v1077
    %v1281 = vunpack.c.h.b16 %v1077
    %v1282 = vunpack.c.l.b16 %v1078
    %v1283 = vunpack.c.h.b16 %v1078
    %v1284 = vunpack.c.l.b16 %v1079
    %v1285 = vunpack.c.h.b16 %v1079
    %v1286 = vunpack.c.l.b16 %v1080
    %v1287 = vunpack.c.h.b16 %v1080
    %v1288 = vunpack.c.l.b16 %v1081
    %v1289 = vunpack.c.h.b16 %v1081
    %v1290 = vunpack.c.l.b16 %v1082
    %v1291 = vunpack.c.h.b16 %v1082
    %v1292 = vunpack.c.l.b16 %v1083
    %v1293 = vunpack.c.h.b16 %v1083
    %v1294 = vunpack.c.l.b16 %v1084
    %v1295 = vunpack.c.h.b16 %v1084
    %v1296 = vunpack.c.l.b16 %v1085
    %v1297 = vunpack.c.h.b16 %v1085
    %v1298 = vunpack.c.l.b16 %v1086
    %v1299 = vunpack.c.h.b16 %v1086
    %v1300 = vunpack.c.l.b16 %v1087
    %v1301 = vunpack.c.h.b16 %v1087
    %v1302 = vpack.c.b16 %v1178, %v1174
    %v1303 = vpack.c.b16 %v1179, %v1175
    %v1304 = vpack.c.b16 %v1180, %v1176
    %v1305 = vpack.c.b16 %v1181, %v1177
    %v1306 = vpack.c.b16 %v1186, %v1182
    %v1307 = vpack.c.b16 %v1187, %v1183
    %v1308 = vpack.c.b16 %v1188, %v1184
    %v1309 = vpack.c.b16 %v1189, %v1185
    %v1310 = vpack.c.b16 %v1194, %v1190
    %v1311 = vpack.c.b16 %v1195, %v1191
    %v1312 = vpack.c.b16 %v1196, %v1192
    %v1313 = vpack.c.b16 %v1197, %v1193
    %v1314 = vpack.c.b16 %v1202, %v1198
    %v1315 = vpack.c.b16 %v1203, %v1199
    %v1316 = vpack.c.b16 %v1204, %v1200
    %v1317 = vpack.c.b16 %v1205, %v1201
    %v1318 = vpack.c.b16 %v1210, %v1206
    %v1319 = vpack.c.b16 %v1211, %v1207
    %v1320 = vpack.c.b16 %v1212, %v1208
    %v1321 = vpack.c.b16 %v1213, %v1209
    %v1322 = vpack.c.b16 %v1218, %v1214
    %v1323 = vpack.c.b16 %v1219, %v1215
    %v1324 = vpack.c.b16 %v1220, %v1216
    %v1325 = vpack.c.b16 %v1221, %v1217
    %v1326 = vpack.c.b16 %v1226, %v1222
    %v1327 = vpack.c.b16 %v1227, %v1223
    %v1328 = vpack.c.b16 %v1228, %v1224
    %v1329 = vpack.c.b16 %v1229, %v1225
    %v1330 = vpack.c.b16 %v1234, %v1230
    %v1331 = vpack.c.b16 %v1235, %v1231
    %v1332 = vpack.c.b16 %v1236, %v1232
    %v1333 = vpack.c.b16 %v1237, %v1233
    %v1334 = vpack.c.b16 %v1242, %v1238
    %v1335 = vpack.c.b16 %v1243, %v1239
    %v1336 = vpack.c.b16 %v1244, %v1240
    %v1337 = vpack.c.b16 %v1245, %v1241
    %v1338 = vpack.c.b16 %v1250, %v1246
    %v1339 = vpack.c.b16 %v1251, %v1247
    %v1340 = vpack.c.b16 %v1252, %v1248
    %v1341 = vpack.c.b16 %v1253, %v1249
    %v1342 = vpack.c.b16 %v1258, %v1254
    %v1343 = vpack.c.b16 %v1259, %v1255
    %v1344 = vpack.c.b16 %v1260, %v1256
    %v1345 = vpack.c.b16 %v1261, %v1257
    %v1346 = vpack.c.b16 %v1266, %v1262
    %v1347 = vpack.c.b16 %v1267, %v1263
    %v1348 = vpack.c.b16 %v1268, %v1264
    %v1349 = vpack.c.b16 %v1269, %v1265
    %v1350 = vpack.c.b16 %v1274, %v1270
    %v1351 = vpack.c.b16 %v1275, %v1271
    %v1352 = vpack.c.b16 %v1276, %v1272
    %v1353 = vpack.c.b16 %v1277, %v1273
    %v1354 = vpack.c.b16 %v1282, %v1278
    %v1355 = vpack.c.b16 %v1283, %v1279
    %v1356 = vpack.c.b16 %v1284, %v1280
    %v1357 = vpack.c.b16 %v1285, %v1281
    %v1358 = vpack.c.b16 %v1290, %v1286
    %v1359 = vpack.c.b16 %v1291, %v1287
    %v1360 = vpack.c.b16 %v1292, %v1288
    %v1361 = vpack.c.b16 %v1293, %v1289
    %v1362 = vpack.c.b16 %v1298, %v1294
    %v1363 = vpack.c.b16 %v1299, %v1295
    %v1364 = vpack.c.b16 %v1300, %v1296
    %v1365 = vpack.c.b16 %v1301, %v1297
    %1430 = vmatprep.subr.bf16.mxu0 %v1303
    %1431 = vmatpush1.bf16.msra.mxu0 %v1302
    %1432 = vmatprep.subr.bf16.mxu0 %v1307
    %1433 = vmatpush1.bf16.msra.mxu0 %v1306
    %1434 = vmatprep.subr.bf16.mxu0 %v1311
    %1435 = vmatpush1.bf16.msra.mxu0 %v1310
    %1436 = vmatprep.subr.bf16.mxu0 %v1315
    %1437 = vmatpush1.bf16.msra.mxu0 %v1314
    %1438 = vmatprep.subr.bf16.mxu0 %v1319
    %1439 = vmatpush1.bf16.msra.mxu0 %v1318
    %1440 = vmatprep.subr.bf16.mxu0 %v1323
    %1441 = vmatpush1.bf16.msra.mxu0 %v1322
    %1442 = vmatprep.subr.bf16.mxu0 %v1327
    %1443 = vmatpush1.bf16.msra.mxu0 %v1326
    %1444 = vmatprep.subr.bf16.mxu0 %v1331
    %1445 = vmatpush1.bf16.msra.mxu0 %v1330
    %1446 = vmatprep.subr.bf16.mxu0 %v1335
    %1447 = vmatpush1.bf16.msra.mxu0 %v1334
    %1448 = vmatprep.subr.bf16.mxu0 %v1339
    %1449 = vmatpush1.bf16.msra.mxu0 %v1338
    %1450 = vmatprep.subr.bf16.mxu0 %v1343
    %1451 = vmatpush1.bf16.msra.mxu0 %v1342
    %1452 = vmatprep.subr.bf16.mxu0 %v1347
    %1453 = vmatpush1.bf16.msra.mxu0 %v1346
    %1454 = vmatprep.subr.bf16.mxu0 %v1351
    %1455 = vmatpush1.bf16.msra.mxu0 %v1350
    %1456 = vmatprep.subr.bf16.mxu0 %v1355
    %1457 = vmatpush1.bf16.msra.mxu0 %v1354
    %1458 = vmatprep.subr.bf16.mxu0 %v1359
    %1459 = vmatpush1.bf16.msra.mxu0 %v1358
    %1460 = vmatprep.subr.bf16.mxu0 %v1363
    %1461 = vmatpush1.bf16.msra.mxu0 %v1362
    %1462 = vmatprep.mubr.bf16.mxu0 %v1023
    %1463 = vmatmul.mubr.bf16.gmra.mrb[0].mxu0 %v1022
    %v1464 = vpop.f32.mrb[0].mxu0
    %v1465 = vadd.f32 %v1093, %v1464
    %v1466 = vpop.f32.mrb[0].mxu0
    %v1467 = vadd.f32 %v1097, %v1466
    %v1468 = vpop.f32.mrb[0].mxu0
    %v1469 = vpop.f32.mrb[0].mxu0
    %1470 = vdwg.mxu0
    %1471 = vmatprep.subr.bf16.mxu0 %v1305
    %1472 = vmatpush1.bf16.msra.mxu0 %v1304
    %1473 = vmatprep.subr.bf16.mxu0 %v1309
    %1474 = vmatpush1.bf16.msra.mxu0 %v1308
    %1475 = vmatprep.subr.bf16.mxu0 %v1313
    %1476 = vmatpush1.bf16.msra.mxu0 %v1312
    %1477 = vmatprep.subr.bf16.mxu0 %v1317
    %1478 = vmatpush1.bf16.msra.mxu0 %v1316
    %1479 = vmatprep.subr.bf16.mxu0 %v1321
    %1480 = vmatpush1.bf16.msra.mxu0 %v1320
    %1481 = vmatprep.subr.bf16.mxu0 %v1325
    %1482 = vmatpush1.bf16.msra.mxu0 %v1324
    %1483 = vmatprep.subr.bf16.mxu0 %v1329
    %1484 = vmatpush1.bf16.msra.mxu0 %v1328
    %1485 = vmatprep.subr.bf16.mxu0 %v1333
    %1486 = vmatpush1.bf16.msra.mxu0 %v1332
    %1487 = vmatprep.subr.bf16.mxu0 %v1337
    %1488 = vmatpush1.bf16.msra.mxu0 %v1336
    %1489 = vmatprep.subr.bf16.mxu0 %v1341
    %1490 = vmatpush1.bf16.msra.mxu0 %v1340
    %1491 = vmatprep.subr.bf16.mxu0 %v1345
    %1492 = vmatpush1.bf16.msra.mxu0 %v1344
    %1493 = vmatprep.subr.bf16.mxu0 %v1349
    %1494 = vmatpush1.bf16.msra.mxu0 %v1348
    %1495 = vmatprep.subr.bf16.mxu0 %v1353
    %1496 = vmatpush1.bf16.msra.mxu0 %v1352
    %1497 = vmatprep.subr.bf16.mxu0 %v1357
    %1498 = vmatpush1.bf16.msra.mxu0 %v1356
    %1499 = vmatprep.subr.bf16.mxu0 %v1361
    %1500 = vmatpush1.bf16.msra.mxu0 %v1360
    %1501 = vmatprep.subr.bf16.mxu0 %v1365
    %1502 = vmatpush1.bf16.msra.mxu0 %v1364
    %1503 = vmatprep.mubr.bf16.mxu0 %v1023
    %1504 = vmatmul.mubr.bf16.gmra.mrb[0].mxu0 %v1022
    %v1505 = vpop.f32.mrb[0].mxu0
    %v1506 = vadd.f32 %v1101, %v1505
    %v1507 = vpop.f32.mrb[0].mxu0
    %v1508 = vadd.f32 %v1105, %v1507
    %v1509 = vpop.f32.mrb[0].mxu0
    %v1510 = vpop.f32.mrb[0].mxu0
    %1511 = vdwg.mxu0
    %1512 = vst [vmem:[#allocation8] sm:$0xff] %v1465
    %1513 = vst [vmem:[#allocation8 + $0x8] sm:$0xff] %v1467
    %1514 = vst [vmem:[#allocation8 + $0x10] sm:$0xff] %v1506
    %1515 = vst [vmem:[#allocation8 + $0x18] sm:$0xff] %v1508
    // Predicated region
    $region34: #{tpu_custom_call.1} parent=1 // pred_check
      _
    $region35: #{tpu_custom_call.1} parent=1 // pred_check_branch
      %1517 = sbr.rel (0) target = $region37
    $region36: #{tpu_custom_call.1} parent=1 // pred_region
      %s1519 = ssub.s32 512, 512
      %1520 = vsyncadd [#allocation4], %s1519
      %s1522 = sshll.u32 [#allocation8], 4
      %s1523 = int_to_ptr.vmem [resolvable:$true] %s1522
      %1525 = dma.vmem_to_hbm [thread:$0]  %s1523, 512, %s5, [#allocation4]
    $region37: #{tpu_custom_call.1} parent=1 // pred_fallthru
      _
    // Predicated region
    $region38: #{tpu_custom_call.1} parent=1 // pred_check
      _
    $region39: #{tpu_custom_call.1} parent=1 // pred_check_branch
      %1527 = sbr.rel (0) target = $region41
    $region40: #{tpu_custom_call.1} parent=1 // pred_region
      %1528 = dma.done [#allocation4], 512
    $region41: #{tpu_custom_call.1} parent=1 // pred_fallthru
      _
    %1529 = vsyncpa [#allocation3], 1
    %1530 = vsyncpa [#allocation6], 1
    %1531 = vsyncpa [#allocation4], 1

</llo_original>
